<compile_context>
chip_gen: v5e
topology: v5e:2x2
jax: 0.10.0
libtpu: 0.0.40
codegen_flags: <defaults>
</compile_context>

<pallas_src>
import jax
import jax.numpy as jnp
from jax.experimental import pallas as pl
from jax.experimental.pallas import tpu as pltpu


def _bce_kernel(y_ref, t_ref, o_ref):
    # Load in native dtype, compute in f32, store back in native dtype.
    y = y_ref[...].astype(jnp.float32)
    t = t_ref[...].astype(jnp.float32)
    one = jnp.float32(1.0)
    eps = jnp.float32(1e-06)
    cy = jnp.clip(y, eps, one - eps)
    log_p = jnp.log(cy)
    log_1mp = jnp.log(one - cy)
    # -(t*log_p + (1-t)*log_1mp) == t*(log_1mp - log_p) - log_1mp
    o_ref[...] = (t * (log_1mp - log_p) - log_1mp).astype(o_ref.dtype)


def _round_up(x, m):
    return ((x + m - 1) // m) * m


def bce_loss(y, t):
    """Elementwise binary cross-entropy, no reduction (matches the PyTorch module)."""
    assert y.shape == t.shape, "y and t must have the same shape"
    orig_shape = y.shape
    out_dtype = y.dtype
    n = y.size
    itemsize = jnp.dtype(y.dtype).itemsize

    # Widest lane-dense slab that divides n exactly -> no pad / no slice copies.
    LANES = None
    for cand in (512, 256, 128):
        if n % cand == 0:
            LANES = cand
            break
    pad_needed = LANES is None
    if pad_needed:
        LANES = 128                      # pad as little as possible
    n_pad = _round_up(n, LANES) if pad_needed else n
    rows = n_pad // LANES

    # ~2 MiB per block per array (native dtype), rows rounded to a multiple of 8.
    TARGET_BLOCK_BYTES = 2 * 1024 * 1024
    max_tile_rows = max(8, (TARGET_BLOCK_BYTES // (LANES * itemsize)) // 8 * 8)

    ROW_ALIGN = 8
    if rows > max_tile_rows:
        tile_rows = max_tile_rows
    elif rows > ROW_ALIGN:
        # Split into >= 2 blocks so both v7x TensorCores get a block.
        tile_rows = _round_up(pl.cdiv(rows, 2), ROW_ALIGN)
        if tile_rows >= rows:
            tile_rows = rows
    else:
        tile_rows = rows                 # tiny input: block == full array (legal)

    grid = (pl.cdiv(rows, tile_rows),)   # ragged last block handled by Pallas

    yf = y.reshape(-1)
    tf = t.reshape(-1)
    if pad_needed:
        # Alignment-only padding (to LANES); sliced off before return.
        yf = jnp.pad(yf, (0, n_pad - n), constant_values=0.5)
        tf = jnp.pad(tf, (0, n_pad - n), constant_values=0.0)
    yf = yf.reshape(rows, LANES)
    tf = tf.reshape(rows, LANES)

    blk = pl.BlockSpec((tile_rows, LANES), lambda i: (i, 0))

    cost = pl.CostEstimate(
        flops=8 * n_pad,
        transcendentals=2 * n_pad,
        bytes_accessed=3 * n_pad * itemsize,
    )

    out = pl.pallas_call(
        _bce_kernel,
        out_shape=jax.ShapeDtypeStruct((rows, LANES), out_dtype),
        grid_spec=pltpu.PrefetchScalarGridSpec(
            num_scalar_prefetch=0,
            grid=grid,
            in_specs=[blk, blk],
            out_specs=pl.BlockSpec((tile_rows, LANES), lambda i: (i, 0)),
        ),
        compiler_params=pltpu.CompilerParams(
            dimension_semantics=("parallel",),
        ),
        cost_estimate=cost,
    )(yf, tf)

    if pad_needed:
        return out.reshape(-1)[:n].reshape(orig_shape)
    return out.reshape(orig_shape)


if __name__ == "__main__":
    key = jax.random.PRNGKey(0)
    k1, k2 = jax.random.split(key)
    # Small NCHW shapes: batch=2, channels=4, spatial=16x16
    shape = (2, 4, 16, 16)
    y = jax.random.uniform(k1, shape, dtype=jnp.float32)                               # predictions in (0, 1)
    t = (jax.random.uniform(k2, shape, dtype=jnp.float32) > 0.5).astype(jnp.float32)   # binary targets

    res = bce_loss(y, t)
    jax.block_until_ready(res)

    # Reference check (plain JAX, same math as the PyTorch module)
    clipped = jnp.clip(y, 1e-06, 1.0 - 1e-06)
    ref = -(t * jnp.log(clipped) + (1.0 - t) * jnp.log(1.0 - clipped))
    assert res.shape == shape
    assert res.dtype == y.dtype
    assert jnp.allclose(res, ref, atol=1e-5, rtol=1e-5)

    print("KERNEL_OK")
</pallas_src>

<mosaic_0001>
module attributes {stable_mosaic.version = 11 : i64} {
  func.func @_bce_kernel(%arg0: i32, %arg1: memref<4x512xf32, #tpu.memory_space<vmem>>, %arg2: memref<4x512xf32, #tpu.memory_space<vmem>>, %arg3: memref<4x512xf32, #tpu.memory_space<vmem>>) attributes {dimension_semantics = [#tpu.dimension_semantics<parallel>], iteration_bounds = array<i64: 1>, scalar_prefetch = 0 : i64, scratch_operands = 0 : i64, tpu.core_type = #tpu.core_type<tc>, window_params = [{transform_indices = @transform_0, window_bounds = array<i64: 4, 512>}, {transform_indices = @transform_1, window_bounds = array<i64: 4, 512>}, {transform_indices = @transform_2, window_bounds = array<i64: 4, 512>}]} {
    %c0 = arith.constant 0 : index
    %c0_0 = arith.constant 0 : index
    %0 = vector.load %arg1[%c0, %c0_0] : memref<4x512xf32, #tpu.memory_space<vmem>>, vector<4x512xf32>
    %c0_1 = arith.constant 0 : index
    %c0_2 = arith.constant 0 : index
    %1 = vector.load %arg2[%c0_1, %c0_2] : memref<4x512xf32, #tpu.memory_space<vmem>>, vector<4x512xf32>
    %cst = arith.constant 1.000000e+00 : f32
    %cst_3 = arith.constant 9.99999997E-7 : f32
    %2 = arith.subf %cst, %cst_3 : f32
    %cst_4 = arith.constant 9.99999997E-7 : f32
    %3 = vector.broadcast %cst_4 : f32 to vector<4x512xf32>
    %4 = arith.maximumf %3, %0 : vector<4x512xf32>
    %5 = vector.broadcast %2 : f32 to vector<4x512xf32>
    %6 = arith.minimumf %5, %4 : vector<4x512xf32>
    %7 = math.log %6 : vector<4x512xf32>
    %cst_5 = arith.constant 1.000000e+00 : f32
    %8 = vector.broadcast %cst_5 : f32 to vector<4x512xf32>
    %9 = arith.subf %8, %6 : vector<4x512xf32>
    %10 = math.log %9 : vector<4x512xf32>
    %11 = arith.subf %10, %7 : vector<4x512xf32>
    %12 = arith.mulf %1, %11 : vector<4x512xf32>
    %13 = arith.subf %12, %10 : vector<4x512xf32>
    %c0_6 = arith.constant 0 : index
    %c0_7 = arith.constant 0 : index
    %14 = vector.load %arg3[%c0_6, %c0_7] : memref<4x512xf32, #tpu.memory_space<vmem>>, vector<4x512xf32>
    tpu.vector_store %arg3[%c0_6, %c0_7], %13 {strides = array<i32>} : memref<4x512xf32, #tpu.memory_space<vmem>>, vector<4x512xf32>,
    return
  }
  func.func @transform_0(%arg0: i32) -> (i32, i32) {
    %c0_i32 = arith.constant 0 : i32
    %c0_i32_0 = arith.constant 0 : i32
    return %arg0, %c0_i32 : i32, i32
  }
  func.func @transform_1(%arg0: i32) -> (i32, i32) {
    %c0_i32 = arith.constant 0 : i32
    %c0_i32_0 = arith.constant 0 : i32
    return %arg0, %c0_i32 : i32, i32
  }
  func.func @transform_2(%arg0: i32) -> (i32, i32) {
    %c0_i32 = arith.constant 0 : i32
    %c0_i32_0 = arith.constant 0 : i32
    return %arg0, %c0_i32 : i32, i32
  }
}

</mosaic_0001>

<llo_original>
// kernel: tpu_custom_call.1
$region0: #{tpu_custom_call.1}
  #allocation0 [shape = 'u32[]', space=smem, size = 0x4, offset = 0x4, fixed_abs, tag = 'smem constant byte address 0x4 - core index']
  #allocation1 [shape = 'u32[72,128]{1,0:T(1,128)}', space=vmem, size = 0x9000, scoped, tag = 'internal scratch']
  %s0 = inlined_call_operand.hbm [shape: f32[4,512], index: 0, kind: input, shape index: {}]
  %s1 = inlined_call_operand.hbm [shape: f32[4,512], index: 1, kind: input, shape index: {}]
  %s2 = inlined_call_operand.hbm [shape: f32[4,512], index: 2, kind: output, shape index: {}]
  %s3 = sld [smem:[#allocation0]]
  $region26: #{tpu_custom_call.1} parent=0
    _
  %s5 = ssub.s32 1, %s3
  %s6 = scalar_select 0, %s5, %s3
  $region1: #{tpu_custom_call.1} parent=0
    #allocation2 [shape = 'u8[8192]{0}', space=vmem, size = 0x2000, scoped, tag = 'input window, operand 0, single buffered']
    #allocation3 [shape = 's32[1]{0}', space=sflag, size = 0x4, scoped, tag = 'scoped memory for tpu_custom_call.1']
    #allocation4 [shape = 's32[1]{0}', space=sflag, size = 0x4, scoped, tag = 'scoped memory for tpu_custom_call.1']
    #allocation5 [shape = 'u8[8192]{0}', space=vmem, size = 0x2000, scoped, tag = 'input window, operand 1, single buffered']
    #allocation6 [shape = 's32[1]{0}', space=sflag, size = 0x4, scoped, tag = 'scoped memory for tpu_custom_call.1']
    #allocation7 [shape = 'u8[8192]{0}', space=vmem, size = 0x2000, scoped, tag = 'output window, operand 0, single buffered']
    %7 = vsyncpa [#allocation3], 0
    %8 = vsyncpa [#allocation6], 0
    %9 = vsyncpa [#allocation4], 0
    // Predicated region
    $region2: #{tpu_custom_call.1} parent=1 // pred_check
      _
    $region3: #{tpu_custom_call.1} parent=1 // pred_check_branch
      %11 = sbr.rel (0) target = $region5
    $region4: #{tpu_custom_call.1} parent=1 // pred_region
      %13 = vsyncadd [#allocation3], 0
      %s15 = sshll.u32 %s0, 4
      %s16 = int_to_ptr.hbm [resolvable:$true] %s15
      %s17 = sshll.u32 [#allocation2], 4
      %s18 = int_to_ptr.vmem [resolvable:$true] %s17
      %20 = dma.hbm_to_vmem [thread:$0]  %s16, 256, %s18, [#allocation3]
    $region5: #{tpu_custom_call.1} parent=1 // pred_fallthru
      _
    // Predicated region
    $region6: #{tpu_custom_call.1} parent=1 // pred_check
      _
    $region7: #{tpu_custom_call.1} parent=1 // pred_check_branch
      %22 = sbr.rel (0) target = $region9
    $region8: #{tpu_custom_call.1} parent=1 // pred_region
      %24 = vsyncadd [#allocation6], 0
      %s26 = sshll.u32 %s1, 4
      %s27 = int_to_ptr.hbm [resolvable:$true] %s26
      %s28 = sshll.u32 [#allocation5], 4
      %s29 = int_to_ptr.vmem [resolvable:$true] %s28
      %31 = dma.hbm_to_vmem [thread:$0]  %s27, 256, %s29, [#allocation6]
    $region9: #{tpu_custom_call.1} parent=1 // pred_fallthru
      _
    // Predicated region
    $region10: #{tpu_custom_call.1} parent=1 // pred_check
      _
    $region11: #{tpu_custom_call.1} parent=1 // pred_check_branch
      %33 = sbr.rel (0) target = $region13
    $region12: #{tpu_custom_call.1} parent=1 // pred_region
      %35 = dma.done [#allocation3], 256
    $region13: #{tpu_custom_call.1} parent=1 // pred_fallthru
      _
    // Predicated region
    $region14: #{tpu_custom_call.1} parent=1 // pred_check
      _
    $region15: #{tpu_custom_call.1} parent=1 // pred_check_branch
      %37 = sbr.rel (0) target = $region17
    $region16: #{tpu_custom_call.1} parent=1 // pred_region
      %39 = dma.done [#allocation6], 256
    $region17: #{tpu_custom_call.1} parent=1 // pred_fallthru
      _
    %v40 = vld [vmem:[#allocation2] sm:$0xff]
    %v41 = vld [vmem:[#allocation2 + $0x8] sm:$0xff]
    %v42 = vld [vmem:[#allocation5] sm:$0xff]
    %v43 = vld [vmem:[#allocation5 + $0x8] sm:$0xff]
    %v44 = vmax.f32 %v40, 1e-06
    %v45 = vmax.f32 %v41, 1e-06
    %v46 = vmin.f32 %v44, 0.999999
    %v47 = vmin.f32 %v45, 0.999999
    %v48 = vlog2.pop %v46
    %v49 = vmul.f32 %v48, 0.6931472
    %v50 = vlog2.pop %v47
    %v51 = vmul.f32 %v50, 0.6931472
    %v52 = vsub.f32 1.0, %v46
    %v53 = vsub.f32 1.0, %v47
    %v54 = vlog2.pop %v52
    %v55 = vmul.f32 %v54, 0.6931472
    %v56 = vlog2.pop %v53
    %v57 = vmul.f32 %v56, 0.6931472
    %v58 = vsub.f32 %v55, %v49
    %v59 = vsub.f32 %v57, %v51
    %v60 = vmul.f32 %v42, %v58
    %v61 = vmul.f32 %v43, %v59
    %v62 = vsub.f32 %v60, %v55
    %v63 = vsub.f32 %v61, %v57
    %64 = vst [vmem:[#allocation7] sm:$0xff] %v62
    %65 = vst [vmem:[#allocation7 + $0x8] sm:$0xff] %v63
    // Predicated region
    $region18: #{tpu_custom_call.1} parent=1 // pred_check
      _
    $region19: #{tpu_custom_call.1} parent=1 // pred_check_branch
      %67 = sbr.rel (0) target = $region21
    $region20: #{tpu_custom_call.1} parent=1 // pred_region
      %69 = vsyncadd [#allocation4], 0
      %s71 = sshll.u32 [#allocation7], 4
      %s72 = int_to_ptr.vmem [resolvable:$true] %s71
      %s73 = sshll.u32 %s2, 4
      %s74 = int_to_ptr.hbm [resolvable:$true] %s73
      %76 = dma.vmem_to_hbm [thread:$0]  %s72, 256, %s74, [#allocation4]
    $region21: #{tpu_custom_call.1} parent=1 // pred_fallthru
      _
    // Predicated region
    $region22: #{tpu_custom_call.1} parent=1 // pred_check
      _
    $region23: #{tpu_custom_call.1} parent=1 // pred_check_branch
      %78 = sbr.rel (0) target = $region25
    $region24: #{tpu_custom_call.1} parent=1 // pred_region
      %80 = dma.done [#allocation4], 256
    $region25: #{tpu_custom_call.1} parent=1 // pred_fallthru
      _
    %81 = vsyncpa [#allocation3], 1
    %82 = vsyncpa [#allocation6], 1
    %83 = vsyncpa [#allocation4], 1

</llo_original>
